<compile_context>
chip_gen: v6e
topology: v6e:2x2x1
jax: 0.10.0
libtpu: 0.0.40
codegen_flags: <defaults>
</compile_context>

<pallas_src>
import functools

import jax
import jax.numpy as jnp
from jax.experimental import pallas as pl
from jax.experimental.pallas import tpu as pltpu

A = 1.0
B = 1.0

_TARGET_BLOCK_BYTES = 4 * 1024 * 1024   # ~4 MiB per block
_VMEM_LIMIT_BYTES = 48 * 1024 * 1024    # < 64 MiB physical on v7x, ample headroom


def _delu_kernel(x_ref, o_ref, *, a, b):
    # f32 compute: no-op cast for f32 inputs, keeps bf16 inputs accurate.
    # TODO(synk): on v6e/v7x a bf16-native exp path could relieve the EUP if a
    # bf16 stream ever becomes EUP-bound; keep f32 for accuracy by default.
    x = x_ref[...].astype(jnp.float32)
    y = x * jnp.exp(-a * jnp.exp(-b * x))
    o_ref[...] = y.astype(o_ref.dtype)


def _sublane_multiple(dtype):
    itemsize = jnp.dtype(dtype).itemsize
    if itemsize >= 4:
        return 8
    if itemsize == 2:
        return 16
    return 32


def _compiler_params():
    return pltpu.CompilerParams(
        dimension_semantics=("parallel",),      # shard grid across TCs on v7x
        vmem_limit_bytes=_VMEM_LIMIT_BYTES,
    )


def _cost_estimate(n, itemsize):
    # ~3 muls + 2 transcendentals per element; read + write of the tensor.
    return pl.CostEstimate(
        flops=3 * n, transcendentals=2 * n, bytes_accessed=2 * n * itemsize
    )


def _delu_2d(flat, n, lanes, a, b):
    """Zero-copy path for n % lanes == 0 (lanes a multiple of 128)."""
    dtype = flat.dtype
    itemsize = jnp.dtype(dtype).itemsize
    sub = _sublane_multiple(dtype)
    rows = n // lanes
    slab = flat.reshape(rows, lanes)            # metadata reshape, no HBM copy

    block_rows = max(sub, (_TARGET_BLOCK_BYTES // (lanes * itemsize)) // sub * sub)
    if block_rows >= rows:
        if rows >= 2 * sub:
            # Keep >= 2 grid steps so both v7x TensorCores get work.
            block_rows = pl.cdiv(pl.cdiv(rows, 2), sub) * sub
        else:
            block_rows = rows                   # tiny array: block == full dims

    grid = (pl.cdiv(rows, block_rows),)         # ragged last block is masked
    out = pl.pallas_call(
        functools.partial(_delu_kernel, a=a, b=b),
        out_shape=jax.ShapeDtypeStruct((rows, lanes), dtype),
        grid=grid,
        in_specs=[pl.BlockSpec((block_rows, lanes), lambda i: (i, 0))],
        out_specs=pl.BlockSpec((block_rows, lanes), lambda i: (i, 0)),
        compiler_params=_compiler_params(),
        cost_estimate=_cost_estimate(n, itemsize),
    )(slab)
    return out.reshape(-1)


def _delu_1d(flat, n, a, b):
    """Ragged sizes: 1-D blocks, masked last block -- no pad / slice passes."""
    dtype = flat.dtype
    itemsize = jnp.dtype(dtype).itemsize
    tile = _sublane_multiple(dtype) * 128       # one packed (sub, 128) tile

    block_n = max(tile, (_TARGET_BLOCK_BYTES // itemsize) // tile * tile)
    if block_n >= n:
        if n >= 2 * tile:
            block_n = pl.cdiv(pl.cdiv(n, 2), tile) * tile   # >= 2 grid steps
        else:
            block_n = n                         # tiny array: block == full dim

    grid = (pl.cdiv(n, block_n),)
    out = pl.pallas_call(
        functools.partial(_delu_kernel, a=a, b=b),
        out_shape=jax.ShapeDtypeStruct((n,), dtype),
        grid=grid,
        in_specs=[pl.BlockSpec((block_n,), lambda i: (i,))],
        out_specs=pl.BlockSpec((block_n,), lambda i: (i,)),
        compiler_params=_compiler_params(),
        cost_estimate=_cost_estimate(n, itemsize),
    )(flat)
    return out


def delu(x, *, a=A, b=B):
    """DELU forward pass; matches torch: x * exp(-a * exp(-b * x))."""
    orig_shape = x.shape
    n = x.size
    flat = x.reshape(-1)                        # metadata-only on contiguous arrays

    if n % 128 == 0:
        # Widest lane (last) dim <= 1024 that divides n exactly -> lane-dense,
        # unmasked vector stores; prefer one that leaves sublane-aligned rows.
        divisors = [c for c in range(1024, 127, -128) if n % c == 0]
        aligned = [c for c in divisors if (n // c) % 8 == 0]
        lanes = (aligned or divisors)[0]
        flat_out = _delu_2d(flat, n, lanes, a, b)
    else:
        flat_out = _delu_1d(flat, n, a, b)

    return flat_out.reshape(orig_shape)


def delu_ref(x, a=A, b=B):
    return x * jnp.exp(-a * jnp.exp(-b * x))


if __name__ == "__main__":
    key = jax.random.PRNGKey(0)

    # Primary test: NCHW tensor matching the module's intended use.
    x = jax.random.normal(key, (2, 4, 16, 16), dtype=jnp.float32)
    y = jax.block_until_ready(delu(x))
    y_ref = delu_ref(x)
    assert y.shape == x.shape and y.dtype == x.dtype
    assert jnp.allclose(y, y_ref, atol=1e-5, rtol=1e-5)

    # Secondary sanity check: ragged size (n % 128 != 0) exercises the 1-D path.
    x2 = jax.random.normal(jax.random.PRNGKey(1), (7, 13, 17), dtype=jnp.float32)
    y2 = jax.block_until_ready(delu(x2))
    assert y2.shape == x2.shape and y2.dtype == x2.dtype
    assert jnp.allclose(y2, delu_ref(x2), atol=1e-5, rtol=1e-5)

    print("KERNEL_OK")
</pallas_src>

<mosaic_0001>
module attributes {stable_mosaic.version = 11 : i64} {
  func.func @_delu_kernel(%arg0: i32, %arg1: memref<8x256xf32, #tpu.memory_space<vmem>>, %arg2: memref<8x256xf32, #tpu.memory_space<vmem>>) attributes {dimension_semantics = [#tpu.dimension_semantics<parallel>], iteration_bounds = array<i64: 1>, scalar_prefetch = 0 : i64, scratch_operands = 0 : i64, tpu.core_type = #tpu.core_type<tc>, window_params = [{transform_indices = @transform_0, window_bounds = array<i64: 8, 256>}, {transform_indices = @transform_1, window_bounds = array<i64: 8, 256>}]} {
    %c0 = arith.constant 0 : index
    %c0_0 = arith.constant 0 : index
    %0 = vector.load %arg1[%c0, %c0_0] : memref<8x256xf32, #tpu.memory_space<vmem>>, vector<8x256xf32>
    %cst = arith.constant -1.000000e+00 : f32
    %1 = vector.broadcast %cst : f32 to vector<8x256xf32>
    %2 = arith.mulf %1, %0 : vector<8x256xf32>
    %3 = math.exp %2 : vector<8x256xf32>
    %cst_1 = arith.constant -1.000000e+00 : f32
    %4 = vector.broadcast %cst_1 : f32 to vector<8x256xf32>
    %5 = arith.mulf %4, %3 : vector<8x256xf32>
    %6 = math.exp %5 : vector<8x256xf32>
    %7 = arith.mulf %0, %6 : vector<8x256xf32>
    %c0_2 = arith.constant 0 : index
    %c0_3 = arith.constant 0 : index
    %8 = vector.load %arg2[%c0_2, %c0_3] : memref<8x256xf32, #tpu.memory_space<vmem>>, vector<8x256xf32>
    tpu.vector_store %arg2[%c0_2, %c0_3], %7 {strides = array<i32>} : memref<8x256xf32, #tpu.memory_space<vmem>>, vector<8x256xf32>,
    return
  }
  func.func @transform_0(%arg0: i32) -> (i32, i32) {
    %c0_i32 = arith.constant 0 : i32
    %c0_i32_0 = arith.constant 0 : i32
    return %arg0, %c0_i32 : i32, i32
  }
  func.func @transform_1(%arg0: i32) -> (i32, i32) {
    %c0_i32 = arith.constant 0 : i32
    %c0_i32_0 = arith.constant 0 : i32
    return %arg0, %c0_i32 : i32, i32
  }
}

</mosaic_0001>

<llo_original>
// kernel: tpu_custom_call.1
$region0: #{tpu_custom_call.1}
  #allocation0 [shape = 'u32[]', space=smem, size = 0x4, offset = 0x4, fixed_abs, tag = 'smem constant byte address 0x4 - core index']
  #allocation1 [shape = 'u32[144,128]{1,0:T(1,128)}', space=vmem, size = 0x12000, scoped, tag = 'internal scratch']
  %s0 = inlined_call_operand.hbm [shape: f32[8,256], index: 0, kind: input, shape index: {}]
  %s1 = inlined_call_operand.hbm [shape: f32[8,256], index: 1, kind: output, shape index: {}]
  %s2 = sld [smem:[#allocation0]]
  $region18: #{tpu_custom_call.1} parent=0
    _
  %s4 = ssub.s32 1, %s2
  %s5 = scalar_select 0, %s4, %s2
  $region1: #{tpu_custom_call.1} parent=0
    #allocation2 [shape = 'u8[8192]{0}', space=vmem, size = 0x2000, scoped, tag = 'input window, operand 0, single buffered']
    #allocation3 [shape = 's32[1]{0}', space=sflag, size = 0x4, scoped, tag = 'scoped memory for tpu_custom_call.1']
    #allocation4 [shape = 's32[1]{0}', space=sflag, size = 0x4, scoped, tag = 'scoped memory for tpu_custom_call.1']
    #allocation5 [shape = 'u8[8192]{0}', space=vmem, size = 0x2000, scoped, tag = 'output window, operand 0, single buffered']
    %6 = vsyncpa [#allocation3], 0
    %7 = vsyncpa [#allocation4], 0
    // Predicated region
    $region2: #{tpu_custom_call.1} parent=1 // pred_check
      _
    $region3: #{tpu_custom_call.1} parent=1 // pred_check_branch
      %9 = sbr.rel (0) target = $region5
    $region4: #{tpu_custom_call.1} parent=1 // pred_region
      %s11 = ssub.s32 256, 256
      %12 = vsyncadd [#allocation3], %s11
      %s14 = sshll.u32 [#allocation2], 4
      %s15 = int_to_ptr.vmem [resolvable:$true] %s14
      %17 = dma.hbm_to_vmem [thread:$0]  %s0, 256, %s15, [#allocation3]
    $region5: #{tpu_custom_call.1} parent=1 // pred_fallthru
      _
    // Predicated region
    $region6: #{tpu_custom_call.1} parent=1 // pred_check
      _
    $region7: #{tpu_custom_call.1} parent=1 // pred_check_branch
      %19 = sbr.rel (0) target = $region9
    $region8: #{tpu_custom_call.1} parent=1 // pred_region
      %20 = dma.done [#allocation3], 256
    $region9: #{tpu_custom_call.1} parent=1 // pred_fallthru
      _
    %v21 = vld [vmem:[#allocation2] sm:$0xff]
    %v22 = vld [vmem:[#allocation2 + $0x8] sm:$0xff]
    %v23 = vmul.f32 %v21, -1.0
    %v24 = vmul.f32 %v22, -1.0
    %v25 = vmul.f32 %v23, 1.442695
    %v26 = vpow.pop %v25
    %v27 = vmul.f32 %v24, 1.442695
    %v28 = vpow.pop %v27
    %v29 = vmul.f32 %v26, -1.0
    %v30 = vmul.f32 %v28, -1.0
    %v31 = vmul.f32 %v29, 1.442695
    %v32 = vpow.pop %v31
    %v33 = vmul.f32 %v30, 1.442695
    %v34 = vpow.pop %v33
    %v35 = vmul.f32 %v21, %v32
    %v36 = vmul.f32 %v22, %v34
    %37 = vst [vmem:[#allocation5] sm:$0xff] %v35
    %38 = vst [vmem:[#allocation5 + $0x8] sm:$0xff] %v36
    // Predicated region
    $region10: #{tpu_custom_call.1} parent=1 // pred_check
      _
    $region11: #{tpu_custom_call.1} parent=1 // pred_check_branch
      %40 = sbr.rel (0) target = $region13
    $region12: #{tpu_custom_call.1} parent=1 // pred_region
      %s42 = ssub.s32 256, 256
      %43 = vsyncadd [#allocation4], %s42
      %s45 = sshll.u32 [#allocation5], 4
      %s46 = int_to_ptr.vmem [resolvable:$true] %s45
      %48 = dma.vmem_to_hbm [thread:$0]  %s46, 256, %s1, [#allocation4]
    $region13: #{tpu_custom_call.1} parent=1 // pred_fallthru
      _
    // Predicated region
    $region14: #{tpu_custom_call.1} parent=1 // pred_check
      _
    $region15: #{tpu_custom_call.1} parent=1 // pred_check_branch
      %50 = sbr.rel (0) target = $region17
    $region16: #{tpu_custom_call.1} parent=1 // pred_region
      %51 = dma.done [#allocation4], 256
    $region17: #{tpu_custom_call.1} parent=1 // pred_fallthru
      _
    %52 = vsyncpa [#allocation3], 1
    %53 = vsyncpa [#allocation4], 1

</llo_original>
